<compile_context>
chip_gen: v7x
topology: tpu7x:2x2x1
jax: 0.10.0
libtpu: 0.0.40
codegen_flags: <defaults>
</compile_context>

<pallas_src>
import math
import functools

import jax
import jax.numpy as jnp
from jax import lax
from jax.experimental import pallas as pl
from jax.experimental.pallas import tpu as pltpu


_NEG = -1e30                       # finite large-negative mask value (avoids inf-inf NaN)
_VMEM_LIMIT = 48 * 1024 * 1024     # headroom under v7x's 64 MiB; raises v5e/v6e scoped default


def _pick_tile(dim, target, base):
    """Largest tile <= target that divides dim and is a multiple of base; else full dim."""
    if dim <= target:
        return dim
    t = (target // base) * base
    while t >= base:
        if dim % t == 0:
            return t
        t -= base
    return dim


# ------------------------- tiled linear: x @ W + b --------------------------

def _linear_kernel(x_ref, w_ref, b_ref, o_ref, acc_ref):
    kk = pl.program_id(2)

    @pl.when(kk == 0)
    def _():
        acc_ref[...] = jnp.zeros_like(acc_ref)

    acc_ref[...] += jnp.dot(x_ref[...], w_ref[...], preferred_element_type=jnp.float32)

    @pl.when(kk == pl.num_programs(2) - 1)
    def _():
        o_ref[...] = (acc_ref[...] + b_ref[...].astype(jnp.float32)).astype(o_ref.dtype)


def pallas_linear(x2d, w, b, *, tm_target=256, tn_target=256, tk_target=512):
    """x2d: (M, K), w: (K, N), b: (N,) -> (M, N), tiled with a K accumulator."""
    M, K = x2d.shape
    N = w.shape[1]
    tm = _pick_tile(M, tm_target, 8)
    tn = _pick_tile(N, tn_target, 128)
    tk = _pick_tile(K, tk_target, 128)
    grid = (M // tm, N // tn, K // tk)
    return pl.pallas_call(
        _linear_kernel,
        out_shape=jax.ShapeDtypeStruct((M, N), x2d.dtype),
        grid=grid,
        in_specs=[
            pl.BlockSpec((tm, tk), lambda i, j, kk: (i, kk)),
            pl.BlockSpec((tk, tn), lambda i, j, kk: (kk, j)),
            pl.BlockSpec((1, tn), lambda i, j, kk: (0, j)),
        ],
        out_specs=pl.BlockSpec((tm, tn), lambda i, j, kk: (i, j)),
        scratch_shapes=[pltpu.VMEM((tm, tn), jnp.float32)],
        compiler_params=pltpu.CompilerParams(
            dimension_semantics=("parallel", "parallel", "arbitrary"),
            vmem_limit_bytes=_VMEM_LIMIT),
    )(x2d, w, b.reshape(1, N))


# -------------------- flash attention (online softmax) ----------------------

def _flash_attn_kernel(*args, scale, causal, tq, tk, has_attn_bias):
    if has_attn_bias:
        (pad_ref, bias_ref, q_ref, k_ref, v_ref,
         o_ref, m_sc, l_sc, acc_sc) = args
    else:
        (pad_ref, q_ref, k_ref, v_ref,
         o_ref, m_sc, l_sc, acc_sc) = args
        bias_ref = None

    qi = pl.program_id(1)
    kv = pl.program_id(2)

    @pl.when(kv == 0)
    def _():
        m_sc[...] = jnp.full_like(m_sc, _NEG)
        l_sc[...] = jnp.zeros_like(l_sc)
        acc_sc[...] = jnp.zeros_like(acc_sc)

    q = q_ref[0]                               # (tq, D), keep input dtype for the MXU
    k = k_ref[0]                               # (tk, D)
    v = v_ref[0]                               # (tk, D)

    # QK^T without transposing K: contract the last dim of both operands.
    s = lax.dot_general(q, k, (((1,), (1,)), ((), ())),
                        preferred_element_type=jnp.float32) * scale   # (tq, tk) f32

    s = s + pad_ref[0]                         # (1, tk) additive key-padding bias
    if has_attn_bias:
        s = s + bias_ref[0]                    # (tq, tk) user-provided additive mask
    if causal:
        row = qi * tq + lax.broadcasted_iota(jnp.int32, (tq, tk), 0)
        col = kv * tk + lax.broadcasted_iota(jnp.int32, (tq, tk), 1)
        s = jnp.where(row >= col, s, _NEG)

    m_prev = m_sc[...]
    m_new = jnp.maximum(m_prev, jnp.max(s, axis=-1, keepdims=True))
    alpha = jnp.exp(m_prev - m_new)
    p = jnp.exp(s - m_new)
    l_sc[...] = alpha * l_sc[...] + jnp.sum(p, axis=-1, keepdims=True)
    acc_sc[...] = alpha * acc_sc[...] + jnp.dot(p.astype(v.dtype), v,
                                                preferred_element_type=jnp.float32)
    m_sc[...] = m_new

    @pl.when(kv == pl.num_programs(2) - 1)
    def _():
        l = l_sc[...]
        inv_l = pl.reciprocal(jnp.where(l > 0.0, l, 1.0), approx=True)
        o_ref[0] = (acc_sc[...] * inv_l).astype(o_ref.dtype)


def pallas_attention(q, k, v, pad_bias, attn_bias, is_causal, heads,
                     *, tq_target=256, tk_target=256):
    """q, k, v: (B*H, S, D); pad_bias: (B, 1, S) additive f32;
    attn_bias: None or (MB, S, S) additive f32 with MB in {1, B*H}."""
    BH, S, D = q.shape
    scale = 1.0 / math.sqrt(D)
    tq = _pick_tile(S, tq_target, 8)
    tk = _pick_tile(S, tk_target, 128)
    grid = (BH, S // tq, S // tk)
    has_attn_bias = attn_bias is not None

    in_specs = [pl.BlockSpec((1, 1, tk), lambda bh, qi, kv: (bh // heads, 0, kv))]
    inputs = [pad_bias]
    if has_attn_bias:
        if attn_bias.shape[0] == 1:
            in_specs.append(pl.BlockSpec((1, tq, tk), lambda bh, qi, kv: (0, qi, kv)))
        else:
            in_specs.append(pl.BlockSpec((1, tq, tk), lambda bh, qi, kv: (bh, qi, kv)))
        inputs.append(attn_bias)
    in_specs += [
        pl.BlockSpec((1, tq, D), lambda bh, qi, kv: (bh, qi, 0)),
        pl.BlockSpec((1, tk, D), lambda bh, qi, kv: (bh, kv, 0)),
        pl.BlockSpec((1, tk, D), lambda bh, qi, kv: (bh, kv, 0)),
    ]
    inputs += [q, k, v]

    kern = functools.partial(_flash_attn_kernel, scale=scale, causal=bool(is_causal),
                             tq=tq, tk=tk, has_attn_bias=has_attn_bias)
    # TODO(synk): when D % 128 == 0, pack the per-head output directly into a
    # lane-dense (B, S, E) slab via the out_spec index_map (removes the head-merge
    # transpose and the masked partial stores for D < 128).
    return pl.pallas_call(
        kern,
        out_shape=jax.ShapeDtypeStruct((BH, S, D), q.dtype),
        grid=grid,
        in_specs=in_specs,
        out_specs=pl.BlockSpec((1, tq, D), lambda bh, qi, kv: (bh, qi, 0)),
        scratch_shapes=[
            pltpu.VMEM((tq, 1), jnp.float32),   # running max
            pltpu.VMEM((tq, 1), jnp.float32),   # running sum
            pltpu.VMEM((tq, D), jnp.float32),   # output accumulator
        ],
        compiler_params=pltpu.CompilerParams(
            dimension_semantics=("parallel", "parallel", "arbitrary"),
            vmem_limit_bytes=_VMEM_LIMIT),
    )(*inputs)


# ------------------------------- JAX glue -----------------------------------

def causal_mask(seq_len, dtype):
    m = jnp.full((seq_len, seq_len), -jnp.inf, dtype=dtype)
    return jnp.triu(m, k=1)


def combine_masks(attn_mask, pad_mask, heads=1, dtype=jnp.float32):
    def floatify(x):
        if x is None:
            return None
        if x.dtype == jnp.bool_:
            return jnp.where(x, -jnp.inf, 0.0).astype(dtype)
        return x.astype(dtype)

    mask = floatify(attn_mask)
    if pad_mask is not None:
        BSZ, SL = pad_mask.shape
        key_mask = pad_mask.reshape(BSZ, 1, 1, SL)
        key_mask = jnp.broadcast_to(key_mask, (BSZ, heads, 1, SL))
        key_mask = floatify(key_mask)
        mask = mask + key_mask if mask is not None else key_mask
    return mask


def _prep_attn_bias(attn_mask, B, H, S):
    """Normalize an optional attention mask to an additive f32 (MB, S, S) bias."""
    if attn_mask is None:
        return None
    am = attn_mask
    if am.dtype == jnp.bool_:
        am = jnp.where(am, _NEG, 0.0)
    am = am.astype(jnp.float32)
    if am.ndim == 2:
        return am.reshape(1, S, S)
    if am.ndim == 3:
        return am.reshape(1, S, S) if am.shape[0] == 1 else am.reshape(-1, S, S)
    # 4-D, broadcastable to (B, H, S, S)
    if am.shape[0] == 1 and am.shape[1] == 1:
        return am.reshape(1, S, S)
    am = jnp.broadcast_to(am, (B, H, S, S))
    return am.reshape(B * H, S, S)


def apply_rotary_emb(q, k, theta=10000.0):
    # Interleaved-pair (complex) RoPE convention; q, k: (B, H, S, D).
    # TODO(synk): fuse RoPE into the attention kernel (pltpu.roll) to save one
    # q/k HBM round trip.
    D = q.shape[-1]
    S = q.shape[-2]
    inv_freq = 1.0 / (theta ** (jnp.arange(0, D, 2, dtype=jnp.float32) / D))
    t = jnp.arange(S, dtype=jnp.float32)
    freqs = jnp.outer(t, inv_freq)                 # (S, D/2)
    cos = jnp.cos(freqs)[None, None]               # (1, 1, S, D/2)
    sin = jnp.sin(freqs)[None, None]

    def rot(x):
        orig_shape = x.shape
        xr = x.reshape(orig_shape[:-1] + (D // 2, 2))
        x1, x2 = xr[..., 0], xr[..., 1]
        r = jnp.stack([x1 * cos - x2 * sin, x1 * sin + x2 * cos], axis=-1)
        return r.reshape(orig_shape).astype(x.dtype)

    return rot(q), rot(k)


class SelfAttentionPallas:
    def __init__(self, embed_dim, heads, key, dropout=0.0):
        assert embed_dim % heads == 0
        self.embed_size = embed_dim
        self.num_heads = heads
        self.head_dim = embed_dim // heads
        self.dropout = dropout  # TODO(synk): training-mode dropout not implemented (inference: p=0)
        k1, k2, k3, k4 = jax.random.split(key, 4)
        bound = 1.0 / math.sqrt(embed_dim)  # nn.Linear default init range
        self.qkv_w = jax.random.uniform(k1, (embed_dim, 3 * embed_dim),
                                        minval=-bound, maxval=bound, dtype=jnp.float32)
        self.qkv_b = jax.random.uniform(k2, (3 * embed_dim,),
                                        minval=-bound, maxval=bound, dtype=jnp.float32)
        self.out_w = jax.random.uniform(k3, (embed_dim, embed_dim),
                                        minval=-bound, maxval=bound, dtype=jnp.float32)
        self.out_b = jax.random.uniform(k4, (embed_dim,),
                                        minval=-bound, maxval=bound, dtype=jnp.float32)

    def __call__(self, x, pad_mask=None, attn_mask=None, is_causal=False):
        assert not is_causal or (pad_mask is None and attn_mask is None), \
            "is_causal not supported with padding or attention masks."
        B, S, E = x.shape
        H, D = self.num_heads, self.head_dim

        qkv = pallas_linear(x.reshape(B * S, E), self.qkv_w, self.qkv_b)
        qkv = qkv.reshape(B, S, 3 * E)
        q, k, v = jnp.split(qkv, 3, axis=-1)

        # TODO(synk): fold head split/merge into the attention BlockSpec index_maps
        # (avoids these HBM transposes) once D is a multiple of 128.
        def split_heads(t):  # (B, S, E) -> (B, H, S, D)
            return t.reshape(B, S, H, D).transpose(0, 2, 1, 3)

        q, k, v = map(split_heads, (q, k, v))
        q, k = apply_rotary_emb(q, k)

        # Padding mask -> tiny (B, 1, S) additive key bias; causal handled in-kernel.
        if pad_mask is not None:
            if pad_mask.dtype == jnp.bool_:
                pad_bias = jnp.where(pad_mask, _NEG, 0.0)
            else:
                pad_bias = pad_mask
            pad_bias = pad_bias.astype(jnp.float32).reshape(B, 1, S)
        else:
            pad_bias = jnp.zeros((B, 1, S), jnp.float32)

        attn_bias = _prep_attn_bias(attn_mask, B, H, S)

        attn = pallas_attention(q.reshape(B * H, S, D),
                                k.reshape(B * H, S, D),
                                v.reshape(B * H, S, D),
                                pad_bias, attn_bias, is_causal, H)

        attn = attn.reshape(B, H, S, D).transpose(0, 2, 1, 3).reshape(B, S, E)
        out = pallas_linear(attn.reshape(B * S, E), self.out_w, self.out_b)
        return out.reshape(B, S, E)

    # pure-JAX reference for correctness checking
    def reference(self, x, pad_mask=None, attn_mask=None, is_causal=False):
        B, S, E = x.shape
        H, D = self.num_heads, self.head_dim
        qkv = x @ self.qkv_w + self.qkv_b
        q, k, v = jnp.split(qkv, 3, axis=-1)
        sh = lambda t: t.reshape(B, S, H, D).transpose(0, 2, 1, 3)
        q, k, v = map(sh, (q, k, v))
        mask = combine_masks(attn_mask, pad_mask, H, x.dtype)
        q, k = apply_rotary_emb(q, k)
        if is_causal:
            cm = causal_mask(S, x.dtype)
            mask = cm if mask is None else mask + cm
        s = jnp.einsum("bhqd,bhkd->bhqk", q, k) / math.sqrt(D)
        if mask is not None:
            s = s + mask
        p = jax.nn.softmax(s, axis=-1)
        o = jnp.einsum("bhqk,bhkd->bhqd", p, v)
        o = o.transpose(0, 2, 1, 3).reshape(B, S, E)
        return o @ self.out_w + self.out_b


if __name__ == "__main__":
    key = jax.random.PRNGKey(0)
    k_param, k_x = jax.random.split(key)

    B, S, E, H = 2, 8, 32, 4
    x = jax.random.normal(k_x, (B, S, E), dtype=jnp.float32)

    module = SelfAttentionPallas(embed_dim=E, heads=H, key=k_param)

    # causal path (in-kernel causal mask)
    out = jax.block_until_ready(module(x, is_causal=True))
    ref = module.reference(x, is_causal=True)
    assert out.shape == (B, S, E)
    assert jnp.allclose(out, ref, atol=5e-3, rtol=5e-3), "causal mismatch vs JAX reference"

    # key-padding path (in-kernel additive key bias; no (B*H,S,S) mask in HBM)
    pad_mask = jnp.array([[False] * 6 + [True] * 2,
                          [False] * 8], dtype=jnp.bool_)
    out_p = jax.block_until_ready(module(x, pad_mask=pad_mask))
    ref_p = module.reference(x, pad_mask=pad_mask)
    assert jnp.allclose(out_p, ref_p, atol=5e-3, rtol=5e-3), "pad-mask mismatch vs JAX reference"

    print("KERNEL_OK")
</pallas_src>

<mosaic_0001>
module attributes {stable_mosaic.version = 11 : i64} {
  func.func @_linear_kernel(%arg0: i32, %arg1: i32, %arg2: i32, %arg3: memref<16x32xf32, #tpu.memory_space<vmem>>, %arg4: memref<32x96xf32, #tpu.memory_space<vmem>>, %arg5: memref<1x96xf32, #tpu.memory_space<vmem>>, %arg6: memref<16x96xf32, #tpu.memory_space<vmem>>, %arg7: memref<16x96xf32, #tpu.memory_space<vmem>>) attributes {dimension_semantics = [#tpu.dimension_semantics<parallel>, #tpu.dimension_semantics<parallel>, #tpu.dimension_semantics<arbitrary>], iteration_bounds = array<i64: 1, 1, 1>, scalar_prefetch = 0 : i64, scratch_operands = 1 : i64, tpu.core_type = #tpu.core_type<tc>, window_params = [{transform_indices = @transform_0, window_bounds = array<i64: 16, 32>}, {transform_indices = @transform_1, window_bounds = array<i64: 32, 96>}, {transform_indices = @transform_2, window_bounds = array<i64: 1, 96>}, {transform_indices = @transform_3, window_bounds = array<i64: 16, 96>}]} {
    %c0_i32 = arith.constant 0 : i32
    %0 = arith.cmpi eq, %arg2, %c0_i32 : i32
    %1 = arith.extui %0 : i1 to i32
    %c0_i32_0 = arith.constant 0 : i32
    %2 = arith.cmpi ne, %1, %c0_i32_0 : i32
    scf.if %2 {
      %cst_10 = arith.constant 0.000000e+00 : f32
      %12 = vector.broadcast %cst_10 : f32 to vector<16x96xf32>
      %c0_11 = arith.constant 0 : index
      %c0_12 = arith.constant 0 : index
      %13 = vector.load %arg7[%c0_11, %c0_12] : memref<16x96xf32, #tpu.memory_space<vmem>>, vector<16x96xf32>
      tpu.vector_store %arg7[%c0_11, %c0_12], %12 {strides = array<i32>} : memref<16x96xf32, #tpu.memory_space<vmem>>, vector<16x96xf32>,
    } else {
    }
    %c0 = arith.constant 0 : index
    %c0_1 = arith.constant 0 : index
    %3 = vector.load %arg7[%c0, %c0_1] : memref<16x96xf32, #tpu.memory_space<vmem>>, vector<16x96xf32>
    %c0_2 = arith.constant 0 : index
    %c0_3 = arith.constant 0 : index
    %4 = vector.load %arg3[%c0_2, %c0_3] : memref<16x32xf32, #tpu.memory_space<vmem>>, vector<16x32xf32>
    %c0_4 = arith.constant 0 : index
    %c0_5 = arith.constant 0 : index
    %5 = vector.load %arg4[%c0_4, %c0_5] : memref<32x96xf32, #tpu.memory_space<vmem>>, vector<32x96xf32>
    %cst = arith.constant dense<0.000000e+00> : vector<16x96xf32>
    %6 = tpu.matmul %4, %5, %cst {dimension_numbers = #tpu.dot_dimension_numbers<[1], [0], [0], [1], [0, 0, 1, 1], [], []>} : vector<16x32xf32>, vector<32x96xf32>, vector<16x96xf32> -> vector<16x96xf32>
    %7 = arith.addf %3, %6 : vector<16x96xf32>
    %c0_6 = arith.constant 0 : index
    %c0_7 = arith.constant 0 : index
    %8 = vector.load %arg7[%c0_6, %c0_7] : memref<16x96xf32, #tpu.memory_space<vmem>>, vector<16x96xf32>
    tpu.vector_store %arg7[%c0_6, %c0_7], %7 {strides = array<i32>} : memref<16x96xf32, #tpu.memory_space<vmem>>, vector<16x96xf32>,
    %c0_i32_8 = arith.constant 0 : i32
    %9 = arith.cmpi eq, %arg2, %c0_i32_8 : i32
    %10 = arith.extui %9 : i1 to i32
    %c0_i32_9 = arith.constant 0 : i32
    %11 = arith.cmpi ne, %10, %c0_i32_9 : i32
    scf.if %11 {
      %c0_10 = arith.constant 0 : index
      %c0_11 = arith.constant 0 : index
      %12 = vector.load %arg7[%c0_10, %c0_11] : memref<16x96xf32, #tpu.memory_space<vmem>>, vector<16x96xf32>
      %c0_12 = arith.constant 0 : index
      %c0_13 = arith.constant 0 : index
      %13 = vector.load %arg5[%c0_12, %c0_13] : memref<1x96xf32, #tpu.memory_space<vmem>>, vector<1x96xf32>
      %14 = vector.broadcast %13 : vector<1x96xf32> to vector<16x96xf32>
      %15 = arith.addf %12, %14 : vector<16x96xf32>
      %c0_14 = arith.constant 0 : index
      %c0_15 = arith.constant 0 : index
      %16 = vector.load %arg6[%c0_14, %c0_15] : memref<16x96xf32, #tpu.memory_space<vmem>>, vector<16x96xf32>
      tpu.vector_store %arg6[%c0_14, %c0_15], %15 {strides = array<i32>} : memref<16x96xf32, #tpu.memory_space<vmem>>, vector<16x96xf32>,
    } else {
    }
    return
  }
  func.func @transform_0(%arg0: i32, %arg1: i32, %arg2: i32) -> (i32, i32) {
    %c0_i32 = arith.constant 0 : i32
    return %arg0, %arg2 : i32, i32
  }
  func.func @transform_1(%arg0: i32, %arg1: i32, %arg2: i32) -> (i32, i32) {
    %c0_i32 = arith.constant 0 : i32
    return %arg2, %arg1 : i32, i32
  }
  func.func @transform_2(%arg0: i32, %arg1: i32, %arg2: i32) -> (i32, i32) {
    %c0_i32 = arith.constant 0 : i32
    %c0_i32_0 = arith.constant 0 : i32
    return %c0_i32, %arg1 : i32, i32
  }
  func.func @transform_3(%arg0: i32, %arg1: i32, %arg2: i32) -> (i32, i32) {
    %c0_i32 = arith.constant 0 : i32
    return %arg0, %arg1 : i32, i32
  }
}

</mosaic_0001>

<llo_original>
// kernel: tpu_custom_call.1
$region0: #{tpu_custom_call.1}
  #allocation0 [shape = 'u32[]', space=smem, size = 0x4, offset = 0x4, fixed_abs, tag = 'smem constant byte address 0x4 - core index']
  #allocation1 [shape = 'u32[144,128]{1,0:T(1,128)}', space=vmem, size = 0x12000, scoped, tag = 'internal scratch']
  #allocation2 [shape = 'f32[16,96]{1,0:T(8,128)}', space=vmem, size = 0x2000, scoped, tag = 'scratch operand']
  %s0 = inlined_call_operand.hbm [shape: f32[16,32], index: 0, kind: input, shape index: {}]
  %s1 = inlined_call_operand.hbm [shape: f32[32,96], index: 1, kind: input, shape index: {}]
  %s2 = inlined_call_operand.vmem [shape: f32[1,96], index: 2, kind: input, shape index: {}]
  %s3 = inlined_call_operand.hbm [shape: f32[16,96], index: 3, kind: output, shape index: {}]
  %s4 = sld [smem:[#allocation0]]
  $region38: #{tpu_custom_call.1} parent=0
    _
  %s6 = ssub.s32 1, %s4
  %s7 = scalar_select 0, %s6, %s4
  $region1: #{tpu_custom_call.1} parent=0
    #allocation3 [shape = 'u8[8192]{0}', space=vmem, size = 0x2000, scoped, tag = 'input window, operand 0, single buffered']
    #allocation4 [shape = 's32[1]{0}', space=sflag, size = 0x4, scoped, tag = 'scoped memory for tpu_custom_call.1']
    #allocation5 [shape = 's32[1]{0}', space=sflag, size = 0x4, scoped, tag = 'scoped memory for tpu_custom_call.1']
    #allocation6 [shape = 'u8[16384]{0}', space=vmem, size = 0x4000, scoped, tag = 'input window, operand 1, single buffered']
    #allocation7 [shape = 's32[1]{0}', space=sflag, size = 0x4, scoped, tag = 'scoped memory for tpu_custom_call.1']
    #allocation8 [shape = 'u8[8192]{0}', space=vmem, size = 0x2000, scoped, tag = 'output window, operand 0, single buffered']
    %8 = vsyncpa [#allocation4], 0
    %9 = vsyncpa [#allocation7], 0
    %10 = vsyncpa [#allocation5], 0
    // Predicated region
    $region2: #{tpu_custom_call.1} parent=1 // pred_check
      _
    $region3: #{tpu_custom_call.1} parent=1 // pred_check_branch
      %12 = sbr.rel (0) target = $region5
    $region4: #{tpu_custom_call.1} parent=1 // pred_region
      %s14 = ssub.s32 256, 256
      %15 = vsyncadd [#allocation4], %s14
      %s16 = sshll.u32 [#allocation3], 4
      %s17 = int_to_ptr.vmem [resolvable:$true] %s16
      %22 = dma.hbm_to_vmem [thread:$0]  %s0, 256, %s17, [#allocation4], 128, 128, 8
    $region5: #{tpu_custom_call.1} parent=1 // pred_fallthru
      _
    // Predicated region
    $region6: #{tpu_custom_call.1} parent=1 // pred_check
      _
    $region7: #{tpu_custom_call.1} parent=1 // pred_check_branch
      %24 = sbr.rel (0) target = $region9
    $region8: #{tpu_custom_call.1} parent=1 // pred_region
      %s26 = ssub.s32 512, 512
      %27 = vsyncadd [#allocation7], %s26
      %s28 = sshll.u32 [#allocation6], 4
      %s29 = int_to_ptr.vmem [resolvable:$true] %s28
      %34 = dma.hbm_to_vmem [thread:$0]  %s1, 512, %s29, [#allocation7], 128, 128, 8
    $region9: #{tpu_custom_call.1} parent=1 // pred_fallthru
      _
    // Predicated region
    $region10: #{tpu_custom_call.1} parent=1 // pred_check
      _
    $region11: #{tpu_custom_call.1} parent=1 // pred_check_branch
      %36 = sbr.rel (0) target = $region13
    $region12: #{tpu_custom_call.1} parent=1 // pred_region
      _
    $region13: #{tpu_custom_call.1} parent=1 // pred_fallthru
      _
    // Predicated region
    $region14: #{tpu_custom_call.1} parent=1 // pred_check
      _
    $region15: #{tpu_custom_call.1} parent=1 // pred_check_branch
      %38 = sbr.rel (0) target = $region17
    $region16: #{tpu_custom_call.1} parent=1 // pred_region
      %39 = dma.done [#allocation4], 256
    $region17: #{tpu_custom_call.1} parent=1 // pred_fallthru
      _
    // Predicated region
    $region18: #{tpu_custom_call.1} parent=1 // pred_check
      _
    $region19: #{tpu_custom_call.1} parent=1 // pred_check_branch
      %41 = sbr.rel (0) target = $region21
    $region20: #{tpu_custom_call.1} parent=1 // pred_region
      %42 = dma.done [#allocation7], 512
    $region21: #{tpu_custom_call.1} parent=1 // pred_fallthru
      _
    %p43 = scmp.eq.s32.totalorder 0, 0
    // Predicated region
    $region22: #{tpu_custom_call.1} parent=1 // pred_check
      %p44 = pneg %p43
    $region23: #{tpu_custom_call.1} parent=1 // pred_check_branch
      %46 = sbr.rel (%p44) target = $region25
    $region24: #{tpu_custom_call.1} parent=1 // pred_region
      %vm47 = vcmask 785408
      %48 = vst.msk [vmem:[#allocation2] sm:$0xff] %vm47, 0.0
      %49 = vst.msk [vmem:[#allocation2 + $0x8] sm:$0xff] %vm47, 0.0
    $region25: #{tpu_custom_call.1} parent=1 // pred_fallthru
      _
    %v50 = vld [vmem:[#allocation2] sm:$0xff]
    %v51 = vld [vmem:[#allocation2 + $0x8] sm:$0xff]
    %v52 = vld [vmem:[#allocation3] sm:$0xff]
    %v53 = vld [vmem:[#allocation3 + $0x8] sm:$0xff]
    %v54 = vld [vmem:[#allocation6] sm:$0xff]
    %v55 = vld [vmem:[#allocation6 + $0x8] sm:$0xff]
    %v56 = vld [vmem:[#allocation6 + $0x10] sm:$0xff]
    %v57 = vld [vmem:[#allocation6 + $0x18] sm:$0xff]
    %vm58 = vcmask 261120
    %v60 = vsel %vm58, %v52, 0
    %v63 = vsel %vm58, %v53, 0
    %65 = vmatprep.subr.mxu0 0.0
    %66 = vmatpush1.msra.mxu0 %v54
    %67 = vmatprep.subr.mxu0 0.0
    %68 = vmatpush1.msra.mxu0 %v55
    %69 = vmatprep.subr.mxu0 0.0
    %70 = vmatpush1.msra.mxu0 %v56
    %71 = vmatprep.subr.mxu0 0.0
    %72 = vmatpush1.msra.mxu0 %v57
    %73 = vmatprep.subr.mxu0 0.0
    %74 = vmatpush1.msra.mxu0 0.0
    %75 = vmatprep.subr.mxu0 0.0
    %76 = vmatpush1.msra.mxu0 0.0
    %77 = vmatprep.subr.mxu0 0.0
    %78 = vmatpush1.msra.mxu0 0.0
    %79 = vmatprep.subr.mxu0 0.0
    %80 = vmatpush1.msra.mxu0 0.0
    %81 = vmatprep.subr.mxu0 0.0
    %82 = vmatpush1.msra.mxu0 0.0
    %83 = vmatprep.subr.mxu0 0.0
    %84 = vmatpush1.msra.mxu0 0.0
    %85 = vmatprep.subr.mxu0 0.0
    %86 = vmatpush1.msra.mxu0 0.0
    %87 = vmatprep.subr.mxu0 0.0
    %88 = vmatpush1.msra.mxu0 0.0
    %89 = vmatprep.subr.mxu0 0.0
    %90 = vmatpush1.msra.mxu0 0.0
    %91 = vmatprep.subr.mxu0 0.0
    %92 = vmatpush1.msra.mxu0 0.0
    %93 = vmatprep.subr.mxu0 0.0
    %94 = vmatpush1.msra.mxu0 0.0
    %95 = vmatprep.subr.mxu0 0.0
    %96 = vmatpush1.msra.mxu0 0.0
    %97 = vmatprep.subr.mxu0 0.0
    %98 = vmatpush1.msra.mxu0 0.0
    %99 = vmatprep.subr.mxu0 0.0
    %100 = vmatpush1.msra.mxu0 0.0
    %101 = vmatprep.subr.mxu0 0.0
    %102 = vmatpush1.msra.mxu0 0.0
    %103 = vmatprep.subr.mxu0 0.0
    %104 = vmatpush1.msra.mxu0 0.0
    %105 = vmatprep.subr.mxu0 0.0
    %106 = vmatpush1.msra.mxu0 0.0
    %107 = vmatprep.subr.mxu0 0.0
    %108 = vmatpush1.msra.mxu0 0.0
    %109 = vmatprep.subr.mxu0 0.0
    %110 = vmatpush1.msra.mxu0 0.0
    %111 = vmatprep.subr.mxu0 0.0
    %112 = vmatpush1.msra.mxu0 0.0
    %113 = vmatprep.subr.mxu0 0.0
    %114 = vmatpush1.msra.mxu0 0.0
    %115 = vmatprep.subr.mxu0 0.0
    %116 = vmatpush1.msra.mxu0 0.0
    %117 = vmatprep.subr.mxu0 0.0
    %118 = vmatpush1.msra.mxu0 0.0
    %119 = vmatprep.subr.mxu0 0.0
    %120 = vmatpush1.msra.mxu0 0.0
    %121 = vmatprep.subr.mxu0 0.0
    %122 = vmatpush1.msra.mxu0 0.0
    %123 = vmatprep.subr.mxu0 0.0
    %124 = vmatpush1.msra.mxu0 0.0
    %125 = vmatprep.subr.mxu0 0.0
    %126 = vmatpush1.msra.mxu0 0.0
    %127 = vmatprep.subr.mxu0 0.0
    %128 = vmatpush1.msra.mxu0 0.0
    %129 = vmatprep.mubr.f32.mxu0 0.0
    %130 = vmatmul.mubr.f32.gmra.mrb[0].mxu0 %v60
    %v131 = vpop.f32.mrb[0].mxu0
    %v132 = vadd.f32 0.0, %v131
    %v133 = vpop.f32.mrb[0].mxu0
    %134 = vmatprep.mubr.f32.mxu0 0.0
    %135 = vmatmul.mubr.f32.gmra.mrb[0].mxu0 %v63
    %v136 = vpop.f32.mrb[0].mxu0
    %v137 = vadd.f32 0.0, %v136
    %v138 = vpop.f32.mrb[0].mxu0
    %139 = vdwg.mxu0
    %v140 = vadd.f32 %v50, %v132
    %v141 = vadd.f32 %v51, %v137
    %vm142 = vcmask 785408
    %143 = vst.msk [vmem:[#allocation2] sm:$0xff] %vm142, %v140
    %144 = vst.msk [vmem:[#allocation2 + $0x8] sm:$0xff] %vm142, %v141
    // Predicated region
    $region26: #{tpu_custom_call.1} parent=1 // pred_check
      %p145 = pneg %p43
    $region27: #{tpu_custom_call.1} parent=1 // pred_check_branch
      %147 = sbr.rel (%p145) target = $region29
    $region28: #{tpu_custom_call.1} parent=1 // pred_region
      %v148 = vld [vmem:[#allocation2] sm:$0xff]
      %v149 = vld [vmem:[#allocation2 + $0x8] sm:$0xff]
      %v150 = vld [vmem:[%s2] sm:$0x1]
      %v152 = vlaneseq
      %v153 = vshrl.u32 %v152, 7
      %v154 = vsub.s32 0, %v153
      %v155 = vrot.slane %v150, %v154
      %v157 = vadd.f32 %v148, %v155
      %v158 = vadd.f32 %v149, %v155
      %159 = vst.msk [vmem:[#allocation8] sm:$0xff] %vm142, %v157
      %160 = vst.msk [vmem:[#allocation8 + $0x8] sm:$0xff] %vm142, %v158
    $region29: #{tpu_custom_call.1} parent=1 // pred_fallthru
      _
    // Predicated region
    $region30: #{tpu_custom_call.1} parent=1 // pred_check
      _
    $region31: #{tpu_custom_call.1} parent=1 // pred_check_branch
      %162 = sbr.rel (0) target = $region33
    $region32: #{tpu_custom_call.1} parent=1 // pred_region
      %s164 = ssub.s32 256, 256
      %165 = vsyncadd [#allocation5], %s164
      %s166 = sshll.u32 [#allocation8], 4
      %s167 = int_to_ptr.vmem [resolvable:$true] %s166
      %172 = dma.vmem_to_hbm [thread:$0]  %s167, 256, %s3, [#allocation5], 128, 128, 8
    $region33: #{tpu_custom_call.1} parent=1 // pred_fallthru
      _
    // Predicated region
    $region34: #{tpu_custom_call.1} parent=1 // pred_check
      _
    $region35: #{tpu_custom_call.1} parent=1 // pred_check_branch
      %174 = sbr.rel (0) target = $region37
    $region36: #{tpu_custom_call.1} parent=1 // pred_region
      %175 = dma.done [#allocation5], 256
    $region37: #{tpu_custom_call.1} parent=1 // pred_fallthru
      _
    %176 = vsyncpa [#allocation4], 1
    %177 = vsyncpa [#allocation7], 1
    %178 = vsyncpa [#allocation5], 1

</llo_original>
